<compile_context>
chip_gen: v5e
topology: v5e:2x2
jax: 0.10.0
libtpu: 0.0.40
codegen_flags: <defaults>
</compile_context>

<pallas_src>
import functools

import jax
import jax.numpy as jnp
from jax.experimental import pallas as pl
from jax.experimental.pallas import tpu as pltpu

_LANES = 128
_SUBLANES = 8
_SLAB = _SUBLANES * _LANES          # 1024 elements = one (8, 128) f32 tile
_TARGET_BLOCK_SLABS = 512           # (512, 8, 128) f32 = 2 MiB per input block (4096 rows)


def _wbce_kernel(*refs, j_steps, n_full_blocks, rem_slabs, has_pw):
    if has_pw:
        pw_ref, x_ref, t_ref, o_ref = refs
    else:
        x_ref, t_ref, o_ref = refs

    p = pl.program_id(0)            # "parallel" part (megacore split on multi-TC chips)
    j = pl.program_id(1)            # streaming step within the part
    g = p * j_steps + j             # un-clamped global block index (small ints, no overflow)

    @pl.when(j == 0)
    def _():
        o_ref[...] = jnp.zeros_like(o_ref)

    def _loss(x_raw, t_raw):
        x = x_raw.astype(jnp.float32)
        t = t_raw.astype(jnp.float32)
        if has_pw:
            # BCE-with-logits with pos_weight (PyTorch's numerically stable formula).
            pw = pw_ref[0]
            log_weight = 1.0 + (pw - 1.0) * t
            softplus_negx = jnp.log1p(jnp.exp(-jnp.abs(x))) + jnp.maximum(-x, 0.0)
            return (1.0 - t) * x + log_weight * softplus_negx
        # Plain BCE on probabilities; PyTorch clamps the log terms at -100.
        logp = jnp.maximum(jnp.log(x), -100.0)
        log1mp = jnp.maximum(jnp.log1p(-x), -100.0)
        return -(t * logp + (1.0 - t) * log1mp)

    @pl.when(g < n_full_blocks)
    def _():
        # Fully-valid block: fold (tb, 8, 128) -> (8, 128) via leading-dim VPU adds and
        # accumulate into the resident output block.
        o_ref[0] += _loss(x_ref[...], t_ref[...]).sum(axis=0)

    if rem_slabs:                   # static: a single ragged last block exists
        @pl.when(g == n_full_blocks)
        def _():
            # Static slice of the valid prefix: no iota/select, no reads of garbage data.
            o_ref[0] += _loss(x_ref[0:rem_slabs], t_ref[0:rem_slabs]).sum(axis=0)
    # g > n_full_blocks (clamped overflow re-read step): skip all compute.


def _elementwise_loss(x, t, pos_weight):
    """Plain-jnp elementwise loss (used for the tiny unaligned tail and the reference)."""
    x = x.astype(jnp.float32)
    t = t.astype(jnp.float32)
    if pos_weight is not None:
        pw = jnp.float32(pos_weight)
        lw = 1.0 + (pw - 1.0) * t
        sp = jnp.log1p(jnp.exp(-jnp.abs(x))) + jnp.maximum(-x, 0.0)
        return (1.0 - t) * x + lw * sp
    logp = jnp.maximum(jnp.log(x), -100.0)
    log1mp = jnp.maximum(jnp.log1p(-x), -100.0)
    return -(t * logp + (1.0 - t) * log1mp)


def weighted_bce_loss(predictions, targets, pos_weight=None, block_slabs=None):
    """Mean weighted BCE over a (B, C, H, W) tensor pair, computed in a Pallas kernel.

    pos_weight may be None (plain BCE on probabilities) or a float (BCE-with-logits);
    its value is fed to the kernel through SMEM, so changing it does not force a recompile.
    """
    assert predictions.shape == targets.shape
    n = int(predictions.size)
    has_pw = pos_weight is not None

    x_flat = predictions.reshape(-1)   # free reshape of the contiguous NCHW tensor
    t_flat = targets.reshape(-1)

    n_main = (n // _SLAB) * _SLAB      # 1024-aligned prefix handled by the kernel
    tail = n - n_main                  # <= 1023 leftover elements handled in the wrapper

    total = jnp.float32(0.0)

    if n_main > 0:
        rows3 = n_main // _SLAB                               # number of (8, 128) slabs
        tb = min(block_slabs or _TARGET_BLOCK_SLABS, rows3)   # slabs per block
        n_full_blocks = rows3 // tb
        rem_slabs = rows3 - n_full_blocks * tb                # 0 => no ragged block
        nblocks = n_full_blocks + (1 if rem_slabs else 0)
        num_parts = 2 if nblocks >= 2 else 1                  # v7x megacore split
        j_steps = -(-nblocks // num_parts)

        x_main = x_flat if tail == 0 else x_flat[:n_main]
        t_main = t_flat if tail == 0 else t_flat[:n_main]
        x3 = x_main.reshape(rows3, _SUBLANES, _LANES)
        t3 = t_main.reshape(rows3, _SUBLANES, _LANES)

        kernel = functools.partial(
            _wbce_kernel,
            j_steps=j_steps,
            n_full_blocks=n_full_blocks,
            rem_slabs=rem_slabs,
            has_pw=has_pw,
        )

        def in_map(p, j, *_):
            # Clamp so an overflow step (odd nblocks, last part) re-reads the last block;
            # the kernel skips its contribution entirely.
            return (jnp.minimum(p * j_steps + j, nblocks - 1), 0, 0)

        in_bytes = n_main * (x3.dtype.itemsize + t3.dtype.itemsize)
        out_bytes = num_parts * _SLAB * 4
        cost = pl.CostEstimate(
            flops=10 * n_main,
            transcendentals=2 * n_main,
            bytes_accessed=in_bytes + out_bytes,
        )

        call_args = (x3, t3)
        if has_pw:
            call_args = (jnp.asarray([pos_weight], dtype=jnp.float32),) + call_args

        partials = pl.pallas_call(
            kernel,
            out_shape=jax.ShapeDtypeStruct((num_parts, _SUBLANES, _LANES), jnp.float32),
            grid_spec=pltpu.PrefetchScalarGridSpec(
                num_scalar_prefetch=1 if has_pw else 0,
                grid=(num_parts, j_steps),
                in_specs=[
                    pl.BlockSpec((tb, _SUBLANES, _LANES), in_map),
                    pl.BlockSpec((tb, _SUBLANES, _LANES), in_map),
                ],
                # Output block = per-part resident VMEM accumulator across the j axis.
                out_specs=pl.BlockSpec((1, _SUBLANES, _LANES), lambda p, j, *_: (p, 0, 0)),
            ),
            compiler_params=pltpu.CompilerParams(
                dimension_semantics=("parallel", "arbitrary"),
                vmem_limit_bytes=32 * 1024 * 1024,
            ),
            cost_estimate=cost,
        )(*call_args)

        total = total + jnp.sum(partials)

    if tail:
        # Tiny unaligned tail: no full-array pad/copy, just a <1024-element jnp reduction.
        total = total + jnp.sum(
            _elementwise_loss(x_flat[n_main:], t_flat[n_main:], pos_weight))

    return total / jnp.float32(n)


def _reference(predictions, targets, pos_weight=None):
    return jnp.mean(_elementwise_loss(predictions, targets, pos_weight))


if __name__ == "__main__":
    key = jax.random.PRNGKey(0)
    k1, k2 = jax.random.split(key)

    B, C, H, W = 2, 4, 16, 16  # NCHW, matching the PyTorch module docstring
    pos_weight = 2.5

    # Case 1: pos_weight given -> inputs are logits (BCE-with-logits path, aligned size).
    logits = jax.random.normal(k1, (B, C, H, W), dtype=jnp.float32)
    targets = (jax.random.uniform(k2, (B, C, H, W)) > 0.7).astype(jnp.float32)
    loss_pw = weighted_bce_loss(logits, targets, pos_weight=pos_weight)
    jax.block_until_ready(loss_pw)
    ref_pw = _reference(logits, targets, pos_weight=pos_weight)
    assert jnp.allclose(loss_pw, ref_pw, rtol=1e-5, atol=1e-5), (loss_pw, ref_pw)

    # Case 2: no pos_weight -> inputs are probabilities (plain BCE path, aligned size).
    probs = jax.nn.sigmoid(logits)
    loss_plain = weighted_bce_loss(probs, targets, pos_weight=None)
    jax.block_until_ready(loss_plain)
    ref_plain = _reference(probs, targets, pos_weight=None)
    assert jnp.allclose(loss_plain, ref_plain, rtol=1e-5, atol=1e-5), (loss_plain, ref_plain)

    # Case 3: ragged last block + 2-part split + clamped overflow step (small block size
    # forced only to exercise those kernel paths with tiny data).
    l3 = jax.random.normal(k1, (2, 4, 20, 32), dtype=jnp.float32)
    t3 = (jax.random.uniform(k2, (2, 4, 20, 32)) > 0.5).astype(jnp.float32)
    loss3 = weighted_bce_loss(l3, t3, pos_weight=pos_weight, block_slabs=2)
    jax.block_until_ready(loss3)
    ref3 = _reference(l3, t3, pos_weight=pos_weight)
    assert jnp.allclose(loss3, ref3, rtol=1e-5, atol=1e-5), (loss3, ref3)

    # Case 4: unaligned total size -> kernel on the aligned prefix + jnp tail (no pad).
    p4 = jax.nn.sigmoid(jax.random.normal(k1, (2, 4, 17, 16), dtype=jnp.float32))
    t4 = (jax.random.uniform(k2, (2, 4, 17, 16)) > 0.5).astype(jnp.float32)
    loss4 = weighted_bce_loss(p4, t4, pos_weight=None)
    jax.block_until_ready(loss4)
    ref4 = _reference(p4, t4, pos_weight=None)
    assert jnp.allclose(loss4, ref4, rtol=1e-5, atol=1e-5), (loss4, ref4)

    print("KERNEL_OK")
</pallas_src>

<mosaic_0001>
module attributes {stable_mosaic.version = 11 : i64} {
  func.func @_wbce_kernel(%arg0: i32, %arg1: i32, %arg2: memref<1xf32, #tpu.memory_space<smem>>, %arg3: memref<2x8x128xf32, #tpu.memory_space<vmem>>, %arg4: memref<2x8x128xf32, #tpu.memory_space<vmem>>, %arg5: memref<1x8x128xf32, #tpu.memory_space<vmem>>) attributes {dimension_semantics = [#tpu.dimension_semantics<parallel>, #tpu.dimension_semantics<arbitrary>], iteration_bounds = array<i64: 1, 1>, scalar_prefetch = 1 : i64, scratch_operands = 0 : i64, tpu.core_type = #tpu.core_type<tc>, window_params = [{transform_indices = @transform_0, window_bounds = array<i64: 2, 8, 128>}, {transform_indices = @transform_1, window_bounds = array<i64: 2, 8, 128>}, {transform_indices = @transform_2, window_bounds = array<i64: 1, 8, 128>}]} {
    %c1_i32 = arith.constant 1 : i32
    %0 = arith.muli %arg0, %c1_i32 : i32
    %1 = arith.addi %0, %arg1 : i32
    %c0_i32 = arith.constant 0 : i32
    %2 = arith.cmpi eq, %arg1, %c0_i32 : i32
    %3 = arith.extui %2 : i1 to i32
    %c0_i32_0 = arith.constant 0 : i32
    %4 = arith.cmpi ne, %3, %c0_i32_0 : i32
    scf.if %4 {
      %cst = arith.constant 0.000000e+00 : f32
      %8 = vector.broadcast %cst : f32 to vector<1x8x128xf32>
      %c0 = arith.constant 0 : index
      %c0_3 = arith.constant 0 : index
      %c0_4 = arith.constant 0 : index
      %9 = vector.load %arg5[%c0, %c0_3, %c0_4] : memref<1x8x128xf32, #tpu.memory_space<vmem>>, vector<1x8x128xf32>
      tpu.vector_store %arg5[%c0, %c0_3, %c0_4], %8 {strides = array<i32>} : memref<1x8x128xf32, #tpu.memory_space<vmem>>, vector<1x8x128xf32>,
    } else {
    }
    %c1_i32_1 = arith.constant 1 : i32
    %5 = arith.cmpi slt, %1, %c1_i32_1 : i32
    %6 = arith.extui %5 : i1 to i32
    %c0_i32_2 = arith.constant 0 : i32
    %7 = arith.cmpi ne, %6, %c0_i32_2 : i32
    scf.if %7 {
      %c0 = arith.constant 0 : index
      %c0_3 = arith.constant 0 : index
      %c0_4 = arith.constant 0 : index
      %8 = vector.load %arg5[%c0, %c0_3, %c0_4] : memref<1x8x128xf32, #tpu.memory_space<vmem>>, vector<1x8x128xf32>
      %9 = vector.shape_cast %8 : vector<1x8x128xf32> to vector<8x128xf32>
      %c0_5 = arith.constant 0 : index
      %c0_6 = arith.constant 0 : index
      %c0_7 = arith.constant 0 : index
      %10 = vector.load %arg3[%c0_5, %c0_6, %c0_7] : memref<2x8x128xf32, #tpu.memory_space<vmem>>, vector<2x8x128xf32>
      %c0_8 = arith.constant 0 : index
      %c0_9 = arith.constant 0 : index
      %c0_10 = arith.constant 0 : index
      %11 = vector.load %arg4[%c0_8, %c0_9, %c0_10] : memref<2x8x128xf32, #tpu.memory_space<vmem>>, vector<2x8x128xf32>
      %c0_11 = arith.constant 0 : index
      %12 = memref.load %arg2[%c0_11] : memref<1xf32, #tpu.memory_space<smem>>
      %cst = arith.constant 1.000000e+00 : f32
      %13 = arith.subf %12, %cst : f32
      %14 = vector.broadcast %13 : f32 to vector<2x8x128xf32>
      %15 = arith.mulf %14, %11 : vector<2x8x128xf32>
      %cst_12 = arith.constant 1.000000e+00 : f32
      %16 = vector.broadcast %cst_12 : f32 to vector<2x8x128xf32>
      %17 = arith.addf %16, %15 : vector<2x8x128xf32>
      %18 = math.absf %10 : vector<2x8x128xf32>
      %cst_13 = arith.constant 0.000000e+00 : f32
      %19 = vector.broadcast %cst_13 : f32 to vector<2x8x128xf32>
      %20 = arith.subf %19, %18 : vector<2x8x128xf32>
      %21 = math.exp %20 : vector<2x8x128xf32>
      %22 = math.log1p %21 : vector<2x8x128xf32>
      %cst_14 = arith.constant 0.000000e+00 : f32
      %23 = vector.broadcast %cst_14 : f32 to vector<2x8x128xf32>
      %24 = arith.subf %23, %10 : vector<2x8x128xf32>
      %cst_15 = arith.constant 0.000000e+00 : f32
      %25 = vector.broadcast %cst_15 : f32 to vector<2x8x128xf32>
      %26 = arith.maximumf %24, %25 : vector<2x8x128xf32>
      %27 = arith.addf %22, %26 : vector<2x8x128xf32>
      %cst_16 = arith.constant 1.000000e+00 : f32
      %28 = vector.broadcast %cst_16 : f32 to vector<2x8x128xf32>
      %29 = arith.subf %28, %11 : vector<2x8x128xf32>
      %30 = arith.mulf %29, %10 : vector<2x8x128xf32>
      %31 = arith.mulf %17, %27 : vector<2x8x128xf32>
      %32 = arith.addf %30, %31 : vector<2x8x128xf32>
      %cst_17 = arith.constant dense<0.000000e+00> : vector<8x128xf32>
      %33 = vector.multi_reduction <add>, %32, %cst_17 [0] : vector<2x8x128xf32> to vector<8x128xf32>
      %34 = arith.addf %9, %33 : vector<8x128xf32>
      %c0_18 = arith.constant 0 : index
      %c0_19 = arith.constant 0 : index
      %c0_20 = arith.constant 0 : index
      %35 = vector.load %arg5[%c0_18, %c0_19, %c0_20] : memref<1x8x128xf32, #tpu.memory_space<vmem>>, vector<1x8x128xf32>
      %36 = vector.shape_cast %35 : vector<1x8x128xf32> to vector<8x128xf32>
      %37 = vector.shape_cast %34 : vector<8x128xf32> to vector<1x8x128xf32>
      tpu.vector_store %arg5[%c0_18, %c0_19, %c0_20], %37 {strides = array<i32>} : memref<1x8x128xf32, #tpu.memory_space<vmem>>, vector<1x8x128xf32>,
    } else {
    }
    return
  }
  func.func @transform_0(%arg0: i32, %arg1: i32, %arg2: memref<1xf32, #tpu.memory_space<smem>>) -> (i32, i32, i32) {
    %c1_i32 = arith.constant 1 : i32
    %0 = arith.muli %arg0, %c1_i32 : i32
    %1 = arith.addi %0, %arg1 : i32
    %c0_i32 = arith.constant 0 : i32
    %2 = arith.minsi %1, %c0_i32 : i32
    %c0_i32_0 = arith.constant 0 : i32
    %c0_i32_1 = arith.constant 0 : i32
    %c0_i32_2 = arith.constant 0 : i32
    return %2, %c0_i32_0, %c0_i32_1 : i32, i32, i32
  }
  func.func @transform_1(%arg0: i32, %arg1: i32, %arg2: memref<1xf32, #tpu.memory_space<smem>>) -> (i32, i32, i32) {
    %c1_i32 = arith.constant 1 : i32
    %0 = arith.muli %arg0, %c1_i32 : i32
    %1 = arith.addi %0, %arg1 : i32
    %c0_i32 = arith.constant 0 : i32
    %2 = arith.minsi %1, %c0_i32 : i32
    %c0_i32_0 = arith.constant 0 : i32
    %c0_i32_1 = arith.constant 0 : i32
    %c0_i32_2 = arith.constant 0 : i32
    return %2, %c0_i32_0, %c0_i32_1 : i32, i32, i32
  }
  func.func @transform_2(%arg0: i32, %arg1: i32, %arg2: memref<1xf32, #tpu.memory_space<smem>>) -> (i32, i32, i32) {
    %c0_i32 = arith.constant 0 : i32
    %c0_i32_0 = arith.constant 0 : i32
    %c0_i32_1 = arith.constant 0 : i32
    return %arg0, %c0_i32, %c0_i32_0 : i32, i32, i32
  }
}

</mosaic_0001>

<llo_original>
// kernel: tpu_custom_call.1
$region0: #{tpu_custom_call.1}
  #allocation0 [shape = 'u32[]', space=smem, size = 0x4, offset = 0x4, fixed_abs, tag = 'smem constant byte address 0x4 - core index']
  #allocation1 [shape = 'u32[72,128]{1,0:T(1,128)}', space=vmem, size = 0x9000, scoped, tag = 'internal scratch']
  #allocation2 [shape = 's32[1]{0}', space=sflag, size = 0x4, scoped, tag = 'scoped memory for tpu_custom_call.1']
  #allocation3 [shape = 'f32[1]{0:T(128)S(6)}', space=smem, size = 0x200, scoped, tag = 'prefetched SMEM operand 0']
  %s0 = inlined_call_operand.<no memory space> [shape: f32[1], index: 0, kind: input, shape index: {}]
  %s1 = inlined_call_operand.hbm [shape: f32[2,8,128], index: 1, kind: input, shape index: {}]
  %s2 = inlined_call_operand.hbm [shape: f32[2,8,128], index: 2, kind: input, shape index: {}]
  %s3 = inlined_call_operand.hbm [shape: f32[1,8,128], index: 3, kind: output, shape index: {}]
  %s4 = sld [smem:[#allocation0]]
  $region34: #{tpu_custom_call.1} parent=0
    _
  %s6 = ssub.s32 1, %s4
  %s7 = scalar_select 0, %s6, %s4
  %8 = sst [smem:[#allocation3]] %s0
  $region1: #{tpu_custom_call.1} parent=0
    #allocation4 [shape = 'u8[8192]{0}', space=vmem, size = 0x2000, scoped, tag = 'input window, operand 1, single buffered']
    #allocation5 [shape = 's32[1]{0}', space=sflag, size = 0x4, scoped, tag = 'scoped memory for tpu_custom_call.1']
    #allocation6 [shape = 's32[1]{0}', space=sflag, size = 0x4, scoped, tag = 'scoped memory for tpu_custom_call.1']
    #allocation7 [shape = 'u8[8192]{0}', space=vmem, size = 0x2000, scoped, tag = 'input window, operand 2, single buffered']
    #allocation8 [shape = 's32[1]{0}', space=sflag, size = 0x4, scoped, tag = 'scoped memory for tpu_custom_call.1']
    #allocation9 [shape = 'u8[4096]{0}', space=vmem, size = 0x1000, scoped, tag = 'output window, operand 0, single buffered']
    %9 = vsyncpa [#allocation5], 0
    %10 = vsyncpa [#allocation8], 0
    %11 = vsyncpa [#allocation6], 0
    // Predicated region
    $region2: #{tpu_custom_call.1} parent=1 // pred_check
      _
    $region3: #{tpu_custom_call.1} parent=1 // pred_check_branch
      %13 = sbr.rel (0) target = $region5
    $region4: #{tpu_custom_call.1} parent=1 // pred_region
      %s14 = sadd.s32 0, 0
      %p15 = scmp.lt.s32.totalorder %s14, 0
      %s16 = scalar_select %p15, %s14, 0
      %s17 = smul.u32 2, %s16
      %19 = vsyncadd [#allocation5], 0
      %s20 = smul.addr %s17, 8
      %s21 = scalar_lea.hbm %s1, %s20
      %s22 = sshll.u32 %s21, 4
      %s23 = int_to_ptr.hbm [resolvable:$true] %s22
      %s24 = sshll.u32 [#allocation4], 4
      %s25 = int_to_ptr.vmem [resolvable:$true] %s24
      %30 = dma.hbm_to_vmem [thread:$0]  %s23, 256, %s25, [#allocation5], 128, 128, 8
    $region5: #{tpu_custom_call.1} parent=1 // pred_fallthru
      _
    // Predicated region
    $region6: #{tpu_custom_call.1} parent=1 // pred_check
      _
    $region7: #{tpu_custom_call.1} parent=1 // pred_check_branch
      %32 = sbr.rel (0) target = $region9
    $region8: #{tpu_custom_call.1} parent=1 // pred_region
      %s33 = sadd.s32 0, 0
      %p34 = scmp.lt.s32.totalorder %s33, 0
      %s35 = scalar_select %p34, %s33, 0
      %s36 = smul.u32 2, %s35
      %38 = vsyncadd [#allocation8], 0
      %s39 = smul.addr %s36, 8
      %s40 = scalar_lea.hbm %s2, %s39
      %s41 = sshll.u32 %s40, 4
      %s42 = int_to_ptr.hbm [resolvable:$true] %s41
      %s43 = sshll.u32 [#allocation7], 4
      %s44 = int_to_ptr.vmem [resolvable:$true] %s43
      %49 = dma.hbm_to_vmem [thread:$0]  %s42, 256, %s44, [#allocation8], 128, 128, 8
    $region9: #{tpu_custom_call.1} parent=1 // pred_fallthru
      _
    // Predicated region
    $region10: #{tpu_custom_call.1} parent=1 // pred_check
      _
    $region11: #{tpu_custom_call.1} parent=1 // pred_check_branch
      %51 = sbr.rel (0) target = $region13
    $region12: #{tpu_custom_call.1} parent=1 // pred_region
      %53 = dma.done [#allocation5], 256
    $region13: #{tpu_custom_call.1} parent=1 // pred_fallthru
      _
    // Predicated region
    $region14: #{tpu_custom_call.1} parent=1 // pred_check
      _
    $region15: #{tpu_custom_call.1} parent=1 // pred_check_branch
      %55 = sbr.rel (0) target = $region17
    $region16: #{tpu_custom_call.1} parent=1 // pred_region
      %57 = dma.done [#allocation8], 256
    $region17: #{tpu_custom_call.1} parent=1 // pred_fallthru
      _
    %s58 = sadd.s32 0, 0
    %p59 = scmp.lt.s32.totalorder %s58, 0
    %s60 = scalar_select %p59, %s58, 0
    %s61 = smul.u32 2, %s60
    %s62 = sadd.s32 0, 0
    %p63 = scmp.lt.s32.totalorder %s62, 0
    %s64 = scalar_select %p63, %s62, 0
    %s65 = smul.u32 2, %s64
    %s66 = sadd.s32 0, 0
    %p67 = scmp.eq.s32.totalorder 0, 0
    // Predicated region
    $region18: #{tpu_custom_call.1} parent=1 // pred_check
      %p68 = pneg %p67
    $region19: #{tpu_custom_call.1} parent=1 // pred_check_branch
      %70 = sbr.rel (%p68) target = $region21
    $region20: #{tpu_custom_call.1} parent=1 // pred_region
      %71 = vst [vmem:[#allocation9] sm:$0xff] 0.0
    $region21: #{tpu_custom_call.1} parent=1 // pred_fallthru
      _
    %p72 = scmp.lt.s32.totalorder %s66, 1
    // Predicated region
    $region22: #{tpu_custom_call.1} parent=1 // pred_check
      %p73 = pneg %p72
    $region23: #{tpu_custom_call.1} parent=1 // pred_check_branch
      %75 = sbr.rel (%p73) target = $region25
    $region24: #{tpu_custom_call.1} parent=1 // pred_region
      %v76 = vld [vmem:[#allocation9] sm:$0xff]
      %v77 = vld [vmem:[#allocation4] sm:$0xff]
      %v78 = vld [vmem:[#allocation4 + $0x8] sm:$0xff]
      %v79 = vld [vmem:[#allocation7] sm:$0xff]
      %v80 = vld [vmem:[#allocation7 + $0x8] sm:$0xff]
      %s81 = sld [smem:[#allocation3]]
      %s82 = ssub.f32 %s81, 1.0
      %v83 = vstv %s82
      %v84 = vmul.f32 %v83, %v79
      %v85 = vmul.f32 %v83, %v80
      %v86 = vadd.f32 %v84, 1.0
      %v87 = vadd.f32 %v85, 1.0
      %v88 = vand.u32 2147483647, %v77
      %v89 = vand.u32 2147483647, %v78
      %v90 = vsub.f32 0.0, %v88
      %v91 = vsub.f32 0.0, %v89
      %v92 = vmul.f32 %v90, 1.442695
      %v93 = vpow.pop %v92
      %v94 = vmul.f32 %v91, 1.442695
      %v95 = vpow.pop %v94
      %v96 = vadd.f32 %v93, 1.0
      %v97 = vlog2.pop %v96
      %v98 = vmul.f32 %v97, 0.6931472
      %v99 = vmul.f32 -0.5, %v93
      %v100 = vadd.f32 %v99, 1.0
      %v101 = vmul.f32 %v100, %v93
      %v102 = vand.u32 2147483647, %v93
      %vm103 = vcmp.lt.f32.partialorder %v102, 0.0004427343
      %v104 = vsel %vm103, %v101, %v98
      %v105 = vadd.f32 %v95, 1.0
      %v106 = vlog2.pop %v105
      %v107 = vmul.f32 %v106, 0.6931472
      %v108 = vmul.f32 -0.5, %v95
      %v109 = vadd.f32 %v108, 1.0
      %v110 = vmul.f32 %v109, %v95
      %v111 = vand.u32 2147483647, %v95
      %vm112 = vcmp.lt.f32.partialorder %v111, 0.0004427343
      %v113 = vsel %vm112, %v110, %v107
      %v114 = vsub.f32 0.0, %v77
      %v115 = vsub.f32 0.0, %v78
      %v116 = vmax.f32 %v114, 0.0
      %v117 = vmax.f32 %v115, 0.0
      %v118 = vadd.f32 %v104, %v116
      %v119 = vadd.f32 %v113, %v117
      %v120 = vsub.f32 1.0, %v79
      %v121 = vsub.f32 1.0, %v80
      %v122 = vmul.f32 %v120, %v77
      %v123 = vmul.f32 %v121, %v78
      %v124 = vmul.f32 %v86, %v118
      %v125 = vmul.f32 %v87, %v119
      %v126 = vadd.f32 %v122, %v124
      %v127 = vadd.f32 %v123, %v125
      %v128 = vadd.f32 %v126, %v127
      %v129 = vadd.f32 %v76, %v128
      %130 = vst [vmem:[#allocation9] sm:$0xff] %v129
    $region25: #{tpu_custom_call.1} parent=1 // pred_fallthru
      _
    // Predicated region
    $region26: #{tpu_custom_call.1} parent=1 // pred_check
      _
    $region27: #{tpu_custom_call.1} parent=1 // pred_check_branch
      %132 = sbr.rel (0) target = $region29
    $region28: #{tpu_custom_call.1} parent=1 // pred_region
      %134 = vsyncadd [#allocation6], 0
      %s136 = sshll.u32 [#allocation9], 4
      %s137 = int_to_ptr.vmem [resolvable:$true] %s136
      %s138 = sshll.u32 %s3, 4
      %s139 = int_to_ptr.hbm [resolvable:$true] %s138
      %141 = dma.vmem_to_hbm [thread:$0]  %s137, 128, %s139, [#allocation6]
    $region29: #{tpu_custom_call.1} parent=1 // pred_fallthru
      _
    // Predicated region
    $region30: #{tpu_custom_call.1} parent=1 // pred_check
      _
    $region31: #{tpu_custom_call.1} parent=1 // pred_check_branch
      %143 = sbr.rel (0) target = $region33
    $region32: #{tpu_custom_call.1} parent=1 // pred_region
      %145 = dma.done [#allocation6], 128
    $region33: #{tpu_custom_call.1} parent=1 // pred_fallthru
      _
    %146 = vsyncpa [#allocation5], 1
    %147 = vsyncpa [#allocation8], 1
    %148 = vsyncpa [#allocation6], 1

</llo_original>
